<compile_context>
chip_gen: v7x
topology: tpu7x:2x2x1
jax: 0.10.0
libtpu: 0.0.40
codegen_flags: <defaults>
</compile_context>

<pallas_src>
import jax
import jax.numpy as jnp
from jax.experimental import pallas as pl
from jax.experimental.pallas import tpu as pltpu

K = 16       # 4x4 patch positions
LANES = 128  # inner chunk width (bounds vreg live ranges of the pooling accumulators)


# ---------------------------------------------------------------------------
# Kernel
# ---------------------------------------------------------------------------
def sca_kernel(xp_ref, dww_ref, dwb_ref, w1_ref, b1_ref, dtw_ref, dtb_ref, out_ref):
    # xp_ref / out_ref : (K, Cp, Pt)        input patches / gated output tile
    # dww_ref          : (K, Cp, 1)         depthwise-conv weight per patch pos
    # dwb_ref          : (Cp, 1)            depthwise-conv bias
    # w1_ref / b1_ref  : (Crp, Cp)/(Crp, 1) 1x1 conv #1
    # dtw_ref / dtb_ref: (K*Cp, Crp)/(K*Cp, 1)  deconv weight/bias with the second
    #                                           1x1 conv folded in (exact).
    Cp = xp_ref.shape[1]
    Pt = xp_ref.shape[2]
    n_chunks = Pt // LANES

    # Hoisted weight loads: one load per grid step, reused by every chunk / k.
    dww = dww_ref[...].astype(jnp.float32)        # (K, Cp, 1)
    dwb = dwb_ref[...].astype(jnp.float32)        # (Cp, 1)
    w1 = w1_ref[...]                              # (Crp, Cp)
    b1 = b1_ref[...]                              # (Crp, 1)
    dtw = dtw_ref[...]                            # (K*Cp, Crp)
    dtb = dtb_ref[...]                            # (K*Cp, 1)

    # Everything is column-independent, so the whole pipeline runs in 128-lane
    # chunks: accumulators are (Cp, 128) and never spill out of the vreg file.
    for ci in range(n_chunks):
        lo = ci * LANES
        hi = lo + LANES

        # --- fused max-pool + depthwise-conv pooling over the 16 patch positions (VPU)
        xk = xp_ref[0, :, lo:hi].astype(jnp.float32)      # (Cp, 128)
        mp = xk
        cp = xk * dww[0]
        for k in range(1, K):
            xk = xp_ref[k, :, lo:hi].astype(jnp.float32)
            mp = jnp.maximum(mp, xk)
            cp = cp + xk * dww[k]
        pools = mp + cp + dwb                             # (Cp, 128)

        # --- channel MLP first half: 1x1 conv -> ReLU (MXU) ---
        h1 = jnp.maximum(
            jnp.dot(w1, pools, preferred_element_type=jnp.float32) + b1, 0.0)  # (Crp, 128)

        # --- second 1x1 conv + ConvTranspose2d(4, 4) fused into ONE matmul ---
        gate = jax.nn.sigmoid(
            jnp.dot(dtw, h1, preferred_element_type=jnp.float32) + dtb)        # (K*Cp, 128)

        # --- gate the input and store (re-read from VMEM; keeps live ranges small) ---
        for k in range(K):
            g = gate[k * Cp:(k + 1) * Cp, :]              # (Cp, 128) static slice
            out_ref[k, :, lo:hi] = (
                xp_ref[k, :, lo:hi].astype(jnp.float32) * g).astype(out_ref.dtype)


# ---------------------------------------------------------------------------
# Wrapper
# ---------------------------------------------------------------------------
def _cdiv(a, b):
    return -(-a // b)


def _round_up(a, b):
    return _cdiv(a, b) * b


def _vmem_capacity_bytes() -> int:
    """Per-TensorCore VMEM (falls back to the v7x minimum of 64 MiB)."""
    try:
        info = pltpu.get_tpu_info()
        cap = int(getattr(info, "vmem_capacity_bytes", 0) or 0)
        if cap > 0:
            return cap
    except Exception:
        pass
    return 64 * 1024 * 1024


def sca_pallas(x, params):
    """x: (N, C, H, W), H and W divisible by 4. Returns (N, C, H, W)."""
    N, C, H, W = x.shape
    assert H % 4 == 0 and W % 4 == 0, "SCA requires H, W divisible by 4"
    Hp, Wp = H // 4, W // 4
    P = Hp * Wp
    NP = N * P
    Cr = params['w1'].shape[0]

    # Sublane-align channels (f32 sublane tile = 8); padded rows/cols are zeros.
    Cp = max(8, _round_up(C, 8))
    Crp = max(8, _round_up(Cr, 8))
    itemsize = jnp.dtype(x.dtype).itemsize

    # --- VMEM-budgeted lane-tile planning (generation aware, v7x-safe) -----------
    vmem_cap = _vmem_capacity_bytes()
    vmem_limit = int(0.75 * vmem_cap)                 # 48 MiB on v7x, 96 MiB on v5e/v6e
    budget = int(0.55 * vmem_limit)                   # for the double-buffered in/out blocks
    weight_bytes = 4 * (K * Cp * Crp + Crp * Cp + 3 * K * Cp + Crp + Cp)
    fixed = weight_bytes + 4 * (K * Cp * LANES) * 4   # resident weights + chunk temporaries
    per_lane = 4 * K * Cp * itemsize                  # 2 input + 2 output pipeline buffers
    max_lanes = max(LANES, (budget - fixed) // per_lane)
    max_lanes = max(LANES, min(2048, (max_lanes // LANES) * LANES))

    units = _cdiv(NP, LANES)
    max_units = max_lanes // LANES
    n_tiles = _cdiv(units, max_units)
    if n_tiles == 1 and units >= 2:
        n_tiles = 2                                   # keep both v7x TensorCores fed
    tile_units = _cdiv(units, n_tiles)
    n_tiles = _cdiv(units, tile_units)
    Pt = tile_units * LANES
    NPpad = n_tiles * Pt

    # --- NCHW -> (K, C, N*P) packing --------------------------------------------
    # TODO(synk): this packing (and the inverse below) is still a materialized XLA
    # transpose (~2 extra HBM passes). Reading native NCHW blocks in-kernel needs
    # lane/sublane-strided 4x4 gathers or in-kernel relayouts that Mosaic lowers
    # poorly, so the dense-copy transpose is kept; allow_input_fusion was dropped so
    # the pallas input DMA never degenerates into 4-byte strided gathers.
    xp = (x.reshape(N, C, Hp, 4, Wp, 4)
           .transpose(3, 5, 1, 0, 2, 4)               # (kh, kw, C, N, Hp, Wp)
           .reshape(K, C, NP))
    xp = jnp.pad(xp, ((0, 0), (0, Cp - C), (0, NPpad - NP)))

    # --- parameter re-layout (plain JAX glue, all tiny) --------------------------
    f32 = jnp.float32
    dww = params['dw_w'].astype(f32).reshape(C, K).T.reshape(K, C, 1)
    dww = jnp.pad(dww, ((0, 0), (0, Cp - C), (0, 0)))
    dwb = jnp.pad(params['dw_b'].astype(f32).reshape(C, 1), ((0, Cp - C), (0, 0)))
    w1 = jnp.pad(params['w1'].astype(f32).reshape(Cr, C),
                 ((0, Crp - Cr), (0, Cp - C)))
    b1 = jnp.pad(params['b1'].astype(f32).reshape(Cr, 1), ((0, Crp - Cr), (0, 0)))
    w2 = params['w2'].astype(f32).reshape(C, Cr)
    b2 = params['b2'].astype(f32).reshape(C, 1)
    # ConvTranspose2d weight (Cin, Cout, 4, 4) -> (K*C, Cin); row = k*C + c_out.
    dtw_full = params['dt_w'].astype(f32).transpose(2, 3, 1, 0).reshape(K * C, C)
    dtb_full = jnp.tile(params['dt_b'].astype(f32), K).reshape(K * C, 1)
    # Fold the second 1x1 conv into the deconv (exact: everything past ReLU is linear).
    dtw_f = dtw_full @ w2                              # (K*C, Cr)
    dtb_f = dtw_full @ b2 + dtb_full                   # (K*C, 1)
    dtw_f = jnp.pad(dtw_f.reshape(K, C, Cr),
                    ((0, 0), (0, Cp - C), (0, Crp - Cr))).reshape(K * Cp, Crp)
    dtb_f = jnp.pad(dtb_f.reshape(K, C, 1),
                    ((0, 0), (0, Cp - C), (0, 0))).reshape(K * Cp, 1)

    def const_spec(*shape):
        nd = len(shape)
        return pl.BlockSpec(shape, lambda t, _nd=nd: (0,) * _nd)

    cost = pl.CostEstimate(
        flops=int(2 * NPpad * (K * Cp * Crp + Crp * Cp) + 4 * NPpad * K * Cp),
        transcendentals=int(NPpad * K * Cp),
        bytes_accessed=int(2 * K * Cp * NPpad * itemsize + weight_bytes),
    )

    out_p = pl.pallas_call(
        sca_kernel,
        out_shape=jax.ShapeDtypeStruct((K, Cp, NPpad), x.dtype),
        grid=(n_tiles,),
        in_specs=[
            pl.BlockSpec((K, Cp, Pt), lambda t: (0, 0, t)),   # input patches
            const_spec(K, Cp, 1), const_spec(Cp, 1),          # depthwise w / b
            const_spec(Crp, Cp), const_spec(Crp, 1),          # 1x1 conv #1
            const_spec(K * Cp, Crp), const_spec(K * Cp, 1),   # fused deconv (+1x1 #2)
        ],
        out_specs=pl.BlockSpec((K, Cp, Pt), lambda t: (0, 0, t)),
        compiler_params=pltpu.CompilerParams(
            dimension_semantics=("parallel",),
            vmem_limit_bytes=vmem_limit,
        ),
        cost_estimate=cost,
    )(xp, dww, dwb, w1, b1, dtw_f, dtb_f)

    # (K, Cp, NPpad) -> NCHW (drop channel / lane padding).
    out = (out_p[:, :C, :NP]
           .reshape(4, 4, C, N, Hp, Wp)
           .transpose(3, 2, 4, 0, 5, 1)                # (N, C, Hp, kh, Wp, kw)
           .reshape(N, C, H, W))
    return out


# ---------------------------------------------------------------------------
# Pure-JAX reference (matches the PyTorch module, NCHW)
# ---------------------------------------------------------------------------
def sca_reference(x, p):
    N, C, H, W = x.shape
    mp = jax.lax.reduce_window(x, -jnp.inf, jax.lax.max,
                               (1, 1, 4, 4), (1, 1, 4, 4), 'VALID')
    cp = jax.lax.conv_general_dilated(
        x, p['dw_w'], window_strides=(4, 4), padding='VALID',
        dimension_numbers=('NCHW', 'OIHW', 'NCHW'),
        feature_group_count=C) + p['dw_b'][None, :, None, None]
    pools = mp + cp
    h1 = jax.nn.relu(jax.lax.conv_general_dilated(
        pools, p['w1'], (1, 1), 'VALID',
        dimension_numbers=('NCHW', 'OIHW', 'NCHW'))
        + p['b1'][None, :, None, None])
    h2 = jax.lax.conv_general_dilated(
        h1, p['w2'], (1, 1), 'VALID',
        dimension_numbers=('NCHW', 'OIHW', 'NCHW')) + p['b2'][None, :, None, None]
    # ConvTranspose2d(C, C, 4, 4): stride == kernel == 4, no padding.
    d = jnp.einsum('nihw,iokl->nohkwl', h2, p['dt_w'])
    d = d.reshape(N, C, H, W) + p['dt_b'][None, :, None, None]
    return x * jax.nn.sigmoid(d)


if __name__ == "__main__":
    N, C, H, W = 2, 4, 16, 16
    reduction = 2
    Cr = C // reduction

    key = jax.random.PRNGKey(0)
    ks = jax.random.split(key, 9)
    params = {
        'dw_w': 0.1 * jax.random.normal(ks[0], (C, 1, 4, 4), jnp.float32),
        'dw_b': 0.1 * jax.random.normal(ks[1], (C,), jnp.float32),
        'w1':   0.1 * jax.random.normal(ks[2], (Cr, C, 1, 1), jnp.float32),
        'b1':   0.1 * jax.random.normal(ks[3], (Cr,), jnp.float32),
        'w2':   0.1 * jax.random.normal(ks[4], (C, Cr, 1, 1), jnp.float32),
        'b2':   0.1 * jax.random.normal(ks[5], (C,), jnp.float32),
        'dt_w': 0.1 * jax.random.normal(ks[6], (C, C, 4, 4), jnp.float32),
        'dt_b': 0.1 * jax.random.normal(ks[7], (C,), jnp.float32),
    }
    x = jax.random.normal(ks[8], (N, C, H, W), jnp.float32)

    out = jax.block_until_ready(sca_pallas(x, params))
    ref = jax.block_until_ready(sca_reference(x, params))

    assert out.shape == x.shape and out.dtype == x.dtype
    max_err = float(jnp.max(jnp.abs(out - ref)))
    if not bool(jnp.allclose(out, ref, atol=5e-3, rtol=5e-3)):
        raise AssertionError(f"Pallas SCA mismatch vs reference, max abs err = {max_err}")
    print("KERNEL_OK")
</pallas_src>

<mosaic_0001>
module attributes {stable_mosaic.version = 11 : i64} {
  func.func @sca_kernel(%arg0: i32, %arg1: memref<16x8x128xf32, #tpu.memory_space<vmem>>, %arg2: memref<16x8x1xf32, #tpu.memory_space<vmem>>, %arg3: memref<8x1xf32, #tpu.memory_space<vmem>>, %arg4: memref<8x8xf32, #tpu.memory_space<vmem>>, %arg5: memref<8x1xf32, #tpu.memory_space<vmem>>, %arg6: memref<128x8xf32, #tpu.memory_space<vmem>>, %arg7: memref<128x1xf32, #tpu.memory_space<vmem>>, %arg8: memref<16x8x128xf32, #tpu.memory_space<vmem>>) attributes {dimension_semantics = [#tpu.dimension_semantics<parallel>], iteration_bounds = array<i64: 1>, scalar_prefetch = 0 : i64, scratch_operands = 0 : i64, tpu.core_type = #tpu.core_type<tc>, window_params = [{transform_indices = @transform_0, window_bounds = array<i64: 16, 8, 128>}, {pipeline_mode = #tpu.pipeline_mode<synchronous>, transform_indices = @transform_1, window_bounds = array<i64: 16, 8, 1>}, {pipeline_mode = #tpu.pipeline_mode<synchronous>, transform_indices = @transform_2, window_bounds = array<i64: 8, 1>}, {pipeline_mode = #tpu.pipeline_mode<synchronous>, transform_indices = @transform_3, window_bounds = array<i64: 8, 8>}, {pipeline_mode = #tpu.pipeline_mode<synchronous>, transform_indices = @transform_4, window_bounds = array<i64: 8, 1>}, {pipeline_mode = #tpu.pipeline_mode<synchronous>, transform_indices = @transform_5, window_bounds = array<i64: 128, 8>}, {pipeline_mode = #tpu.pipeline_mode<synchronous>, transform_indices = @transform_6, window_bounds = array<i64: 128, 1>}, {transform_indices = @transform_7, window_bounds = array<i64: 16, 8, 128>}]} {
    %c0 = arith.constant 0 : index
    %c0_0 = arith.constant 0 : index
    %c0_1 = arith.constant 0 : index
    %0 = vector.load %arg2[%c0, %c0_0, %c0_1] : memref<16x8x1xf32, #tpu.memory_space<vmem>>, vector<16x8x1xf32>
    %c0_2 = arith.constant 0 : index
    %c0_3 = arith.constant 0 : index
    %1 = vector.load %arg3[%c0_2, %c0_3] : memref<8x1xf32, #tpu.memory_space<vmem>>, vector<8x1xf32>
    %c0_4 = arith.constant 0 : index
    %c0_5 = arith.constant 0 : index
    %2 = vector.load %arg4[%c0_4, %c0_5] : memref<8x8xf32, #tpu.memory_space<vmem>>, vector<8x8xf32>
    %c0_6 = arith.constant 0 : index
    %c0_7 = arith.constant 0 : index
    %3 = vector.load %arg5[%c0_6, %c0_7] : memref<8x1xf32, #tpu.memory_space<vmem>>, vector<8x1xf32>
    %c0_8 = arith.constant 0 : index
    %c0_9 = arith.constant 0 : index
    %4 = vector.load %arg6[%c0_8, %c0_9] : memref<128x8xf32, #tpu.memory_space<vmem>>, vector<128x8xf32>
    %c0_10 = arith.constant 0 : index
    %c0_11 = arith.constant 0 : index
    %5 = vector.load %arg7[%c0_10, %c0_11] : memref<128x1xf32, #tpu.memory_space<vmem>>, vector<128x1xf32>
    %c0_12 = arith.constant 0 : index
    %c0_13 = arith.constant 0 : index
    %c0_14 = arith.constant 0 : index
    %6 = vector.load %arg1[%c0_12, %c0_13, %c0_14] : memref<16x8x128xf32, #tpu.memory_space<vmem>>, vector<1x8x128xf32>
    %7 = vector.shape_cast %6 : vector<1x8x128xf32> to vector<8x128xf32>
    %8 = vector.extract_strided_slice %0 {offsets = [0, 0, 0], sizes = [1, 8, 1], strides = [1, 1, 1]} : vector<16x8x1xf32> to vector<1x8x1xf32>
    %9 = vector.shape_cast %8 : vector<1x8x1xf32> to vector<8x1xf32>
    %10 = vector.broadcast %9 : vector<8x1xf32> to vector<8x128xf32>
    %11 = arith.mulf %7, %10 : vector<8x128xf32>
    %c1 = arith.constant 1 : index
    %c0_15 = arith.constant 0 : index
    %c0_16 = arith.constant 0 : index
    %12 = vector.load %arg1[%c1, %c0_15, %c0_16] : memref<16x8x128xf32, #tpu.memory_space<vmem>>, vector<1x8x128xf32>
    %13 = vector.shape_cast %12 : vector<1x8x128xf32> to vector<8x128xf32>
    %14 = arith.maximumf %7, %13 : vector<8x128xf32>
    %15 = vector.extract_strided_slice %0 {offsets = [1, 0, 0], sizes = [1, 8, 1], strides = [1, 1, 1]} : vector<16x8x1xf32> to vector<1x8x1xf32>
    %16 = vector.shape_cast %15 : vector<1x8x1xf32> to vector<8x1xf32>
    %17 = vector.broadcast %16 : vector<8x1xf32> to vector<8x128xf32>
    %18 = arith.mulf %13, %17 : vector<8x128xf32>
    %19 = arith.addf %11, %18 : vector<8x128xf32>
    %c2 = arith.constant 2 : index
    %c0_17 = arith.constant 0 : index
    %c0_18 = arith.constant 0 : index
    %20 = vector.load %arg1[%c2, %c0_17, %c0_18] : memref<16x8x128xf32, #tpu.memory_space<vmem>>, vector<1x8x128xf32>
    %21 = vector.shape_cast %20 : vector<1x8x128xf32> to vector<8x128xf32>
    %22 = arith.maximumf %14, %21 : vector<8x128xf32>
    %23 = vector.extract_strided_slice %0 {offsets = [2, 0, 0], sizes = [1, 8, 1], strides = [1, 1, 1]} : vector<16x8x1xf32> to vector<1x8x1xf32>
    %24 = vector.shape_cast %23 : vector<1x8x1xf32> to vector<8x1xf32>
    %25 = vector.broadcast %24 : vector<8x1xf32> to vector<8x128xf32>
    %26 = arith.mulf %21, %25 : vector<8x128xf32>
    %27 = arith.addf %19, %26 : vector<8x128xf32>
    %c3 = arith.constant 3 : index
    %c0_19 = arith.constant 0 : index
    %c0_20 = arith.constant 0 : index
    %28 = vector.load %arg1[%c3, %c0_19, %c0_20] : memref<16x8x128xf32, #tpu.memory_space<vmem>>, vector<1x8x128xf32>
    %29 = vector.shape_cast %28 : vector<1x8x128xf32> to vector<8x128xf32>
    %30 = arith.maximumf %22, %29 : vector<8x128xf32>
    %31 = vector.extract_strided_slice %0 {offsets = [3, 0, 0], sizes = [1, 8, 1], strides = [1, 1, 1]} : vector<16x8x1xf32> to vector<1x8x1xf32>
    %32 = vector.shape_cast %31 : vector<1x8x1xf32> to vector<8x1xf32>
    %33 = vector.broadcast %32 : vector<8x1xf32> to vector<8x128xf32>
    %34 = arith.mulf %29, %33 : vector<8x128xf32>
    %35 = arith.addf %27, %34 : vector<8x128xf32>
    %c4 = arith.constant 4 : index
    %c0_21 = arith.constant 0 : index
    %c0_22 = arith.constant 0 : index
    %36 = vector.load %arg1[%c4, %c0_21, %c0_22] : memref<16x8x128xf32, #tpu.memory_space<vmem>>, vector<1x8x128xf32>
    %37 = vector.shape_cast %36 : vector<1x8x128xf32> to vector<8x128xf32>
    %38 = arith.maximumf %30, %37 : vector<8x128xf32>
    %39 = vector.extract_strided_slice %0 {offsets = [4, 0, 0], sizes = [1, 8, 1], strides = [1, 1, 1]} : vector<16x8x1xf32> to vector<1x8x1xf32>
    %40 = vector.shape_cast %39 : vector<1x8x1xf32> to vector<8x1xf32>
    %41 = vector.broadcast %40 : vector<8x1xf32> to vector<8x128xf32>
    %42 = arith.mulf %37, %41 : vector<8x128xf32>
    %43 = arith.addf %35, %42 : vector<8x128xf32>
    %c5 = arith.constant 5 : index
    %c0_23 = arith.constant 0 : index
    %c0_24 = arith.constant 0 : index
    %44 = vector.load %arg1[%c5, %c0_23, %c0_24] : memref<16x8x128xf32, #tpu.memory_space<vmem>>, vector<1x8x128xf32>
    %45 = vector.shape_cast %44 : vector<1x8x128xf32> to vector<8x128xf32>
    %46 = arith.maximumf %38, %45 : vector<8x128xf32>
    %47 = vector.extract_strided_slice %0 {offsets = [5, 0, 0], sizes = [1, 8, 1], strides = [1, 1, 1]} : vector<16x8x1xf32> to vector<1x8x1xf32>
    %48 = vector.shape_cast %47 : vector<1x8x1xf32> to vector<8x1xf32>
    %49 = vector.broadcast %48 : vector<8x1xf32> to vector<8x128xf32>
    %50 = arith.mulf %45, %49 : vector<8x128xf32>
    %51 = arith.addf %43, %50 : vector<8x128xf32>
    %c6 = arith.constant 6 : index
    %c0_25 = arith.constant 0 : index
    %c0_26 = arith.constant 0 : index
    %52 = vector.load %arg1[%c6, %c0_25, %c0_26] : memref<16x8x128xf32, #tpu.memory_space<vmem>>, vector<1x8x128xf32>
    %53 = vector.shape_cast %52 : vector<1x8x128xf32> to vector<8x128xf32>
    %54 = arith.maximumf %46, %53 : vector<8x128xf32>
    %55 = vector.extract_strided_slice %0 {offsets = [6, 0, 0], sizes = [1, 8, 1], strides = [1, 1, 1]} : vector<16x8x1xf32> to vector<1x8x1xf32>
    %56 = vector.shape_cast %55 : vector<1x8x1xf32> to vector<8x1xf32>
    %57 = vector.broadcast %56 : vector<8x1xf32> to vector<8x128xf32>
    %58 = arith.mulf %53, %57 : vector<8x128xf32>
    %59 = arith.addf %51, %58 : vector<8x128xf32>
    %c7 = arith.constant 7 : index
    %c0_27 = arith.constant 0 : index
    %c0_28 = arith.constant 0 : index
    %60 = vector.load %arg1[%c7, %c0_27, %c0_28] : memref<16x8x128xf32, #tpu.memory_space<vmem>>, vector<1x8x128xf32>
    %61 = vector.shape_cast %60 : vector<1x8x128xf32> to vector<8x128xf32>
    %62 = arith.maximumf %54, %61 : vector<8x128xf32>
    %63 = vector.extract_strided_slice %0 {offsets = [7, 0, 0], sizes = [1, 8, 1], strides = [1, 1, 1]} : vector<16x8x1xf32> to vector<1x8x1xf32>
    %64 = vector.shape_cast %63 : vector<1x8x1xf32> to vector<8x1xf32>
    %65 = vector.broadcast %64 : vector<8x1xf32> to vector<8x128xf32>
    %66 = arith.mulf %61, %65 : vector<8x128xf32>
    %67 = arith.addf %59, %66 : vector<8x128xf32>
    %c8 = arith.constant 8 : index
    %c0_29 = arith.constant 0 : index
    %c0_30 = arith.constant 0 : index
    %68 = vector.load %arg1[%c8, %c0_29, %c0_30] : memref<16x8x128xf32, #tpu.memory_space<vmem>>, vector<1x8x128xf32>
    %69 = vector.shape_cast %68 : vector<1x8x128xf32> to vector<8x128xf32>
    %70 = arith.maximumf %62, %69 : vector<8x128xf32>
    %71 = vector.extract_strided_slice %0 {offsets = [8, 0, 0], sizes = [1, 8, 1], strides = [1, 1, 1]} : vector<16x8x1xf32> to vector<1x8x1xf32>
    %72 = vector.shape_cast %71 : vector<1x8x1xf32> to vector<8x1xf32>
    %73 = vector.broadcast %72 : vector<8x1xf32> to vector<8x128xf32>
    %74 = arith.mulf %69, %73 : vector<8x128xf32>
    %75 = arith.addf %67, %74 : vector<8x128xf32>
    %c9 = arith.constant 9 : index
    %c0_31 = arith.constant 0 : index
    %c0_32 = arith.constant 0 : index
    %76 = vector.load %arg1[%c9, %c0_31, %c0_32] : memref<16x8x128xf32, #tpu.memory_space<vmem>>, vector<1x8x128xf32>
    %77 = vector.shape_cast %76 : vector<1x8x128xf32> to vector<8x128xf32>
    %78 = arith.maximumf %70, %77 : vector<8x128xf32>
    %79 = vector.extract_strided_slice %0 {offsets = [9, 0, 0], sizes = [1, 8, 1], strides = [1, 1, 1]} : vector<16x8x1xf32> to vector<1x8x1xf32>
    %80 = vector.shape_cast %79 : vector<1x8x1xf32> to vector<8x1xf32>
    %81 = vector.broadcast %80 : vector<8x1xf32> to vector<8x128xf32>
    %82 = arith.mulf %77, %81 : vector<8x128xf32>
    %83 = arith.addf %75, %82 : vector<8x128xf32>
    %c10 = arith.constant 10 : index
    %c0_33 = arith.constant 0 : index
    %c0_34 = arith.constant 0 : index
    %84 = vector.load %arg1[%c10, %c0_33, %c0_34] : memref<16x8x128xf32, #tpu.memory_space<vmem>>, vector<1x8x128xf32>
    %85 = vector.shape_cast %84 : vector<1x8x128xf32> to vector<8x128xf32>
    %86 = arith.maximumf %78, %85 : vector<8x128xf32>
    %87 = vector.extract_strided_slice %0 {offsets = [10, 0, 0], sizes = [1, 8, 1], strides = [1, 1, 1]} : vector<16x8x1xf32> to vector<1x8x1xf32>
    %88 = vector.shape_cast %87 : vector<1x8x1xf32> to vector<8x1xf32>
    %89 = vector.broadcast %88 : vector<8x1xf32> to vector<8x128xf32>
    %90 = arith.mulf %85, %89 : vector<8x128xf32>
    %91 = arith.addf %83, %90 : vector<8x128xf32>
    %c11 = arith.constant 11 : index
    %c0_35 = arith.constant 0 : index
    %c0_36 = arith.constant 0 : index
    %92 = vector.load %arg1[%c11, %c0_35, %c0_36] : memref<16x8x128xf32, #tpu.memory_space<vmem>>, vector<1x8x128xf32>
    %93 = vector.shape_cast %92 : vector<1x8x128xf32> to vector<8x128xf32>
    %94 = arith.maximumf %86, %93 : vector<8x128xf32>
    %95 = vector.extract_strided_slice %0 {offsets = [11, 0, 0], sizes = [1, 8, 1], strides = [1, 1, 1]} : vector<16x8x1xf32> to vector<1x8x1xf32>
    %96 = vector.shape_cast %95 : vector<1x8x1xf32> to vector<8x1xf32>
    %97 = vector.broadcast %96 : vector<8x1xf32> to vector<8x128xf32>
    %98 = arith.mulf %93, %97 : vector<8x128xf32>
    %99 = arith.addf %91, %98 : vector<8x128xf32>
    %c12 = arith.constant 12 : index
    %c0_37 = arith.constant 0 : index
    %c0_38 = arith.constant 0 : index
    %100 = vector.load %arg1[%c12, %c0_37, %c0_38] : memref<16x8x128xf32, #tpu.memory_space<vmem>>, vector<1x8x128xf32>
    %101 = vector.shape_cast %100 : vector<1x8x128xf32> to vector<8x128xf32>
    %102 = arith.maximumf %94, %101 : vector<8x128xf32>
    %103 = vector.extract_strided_slice %0 {offsets = [12, 0, 0], sizes = [1, 8, 1], strides = [1, 1, 1]} : vector<16x8x1xf32> to vector<1x8x1xf32>
    %104 = vector.shape_cast %103 : vector<1x8x1xf32> to vector<8x1xf32>
    %105 = vector.broadcast %104 : vector<8x1xf32> to vector<8x128xf32>
    %106 = arith.mulf %101, %105 : vector<8x128xf32>
    %107 = arith.addf %99, %106 : vector<8x128xf32>
    %c13 = arith.constant 13 : index
    %c0_39 = arith.constant 0 : index
    %c0_40 = arith.constant 0 : index
    %108 = vector.load %arg1[%c13, %c0_39, %c0_40] : memref<16x8x128xf32, #tpu.memory_space<vmem>>, vector<1x8x128xf32>
    %109 = vector.shape_cast %108 : vector<1x8x128xf32> to vector<8x128xf32>
    %110 = arith.maximumf %102, %109 : vector<8x128xf32>
    %111 = vector.extract_strided_slice %0 {offsets = [13, 0, 0], sizes = [1, 8, 1], strides = [1, 1, 1]} : vector<16x8x1xf32> to vector<1x8x1xf32>
    %112 = vector.shape_cast %111 : vector<1x8x1xf32> to vector<8x1xf32>
    %113 = vector.broadcast %112 : vector<8x1xf32> to vector<8x128xf32>
    %114 = arith.mulf %109, %113 : vector<8x128xf32>
    %115 = arith.addf %107, %114 : vector<8x128xf32>
    %c14 = arith.constant 14 : index
    %c0_41 = arith.constant 0 : index
    %c0_42 = arith.constant 0 : index
    %116 = vector.load %arg1[%c14, %c0_41, %c0_42] : memref<16x8x128xf32, #tpu.memory_space<vmem>>, vector<1x8x128xf32>
    %117 = vector.shape_cast %116 : vector<1x8x128xf32> to vector<8x128xf32>
    %118 = arith.maximumf %110, %117 : vector<8x128xf32>
    %119 = vector.extract_strided_slice %0 {offsets = [14, 0, 0], sizes = [1, 8, 1], strides = [1, 1, 1]} : vector<16x8x1xf32> to vector<1x8x1xf32>
    %120 = vector.shape_cast %119 : vector<1x8x1xf32> to vector<8x1xf32>
    %121 = vector.broadcast %120 : vector<8x1xf32> to vector<8x128xf32>
    %122 = arith.mulf %117, %121 : vector<8x128xf32>
    %123 = arith.addf %115, %122 : vector<8x128xf32>
    %c15 = arith.constant 15 : index
    %c0_43 = arith.constant 0 : index
    %c0_44 = arith.constant 0 : index
    %124 = vector.load %arg1[%c15, %c0_43, %c0_44] : memref<16x8x128xf32, #tpu.memory_space<vmem>>, vector<1x8x128xf32>
    %125 = vector.shape_cast %124 : vector<1x8x128xf32> to vector<8x128xf32>
    %126 = arith.maximumf %118, %125 : vector<8x128xf32>
    %127 = vector.extract_strided_slice %0 {offsets = [15, 0, 0], sizes = [1, 8, 1], strides = [1, 1, 1]} : vector<16x8x1xf32> to vector<1x8x1xf32>
    %128 = vector.shape_cast %127 : vector<1x8x1xf32> to vector<8x1xf32>
    %129 = vector.broadcast %128 : vector<8x1xf32> to vector<8x128xf32>
    %130 = arith.mulf %125, %129 : vector<8x128xf32>
    %131 = arith.addf %123, %130 : vector<8x128xf32>
    %132 = arith.addf %126, %131 : vector<8x128xf32>
    %133 = vector.broadcast %1 : vector<8x1xf32> to vector<8x128xf32>
    %134 = arith.addf %132, %133 : vector<8x128xf32>
    %cst = arith.constant dense<0.000000e+00> : vector<8x128xf32>
    %135 = tpu.matmul %2, %134, %cst {dimension_numbers = #tpu.dot_dimension_numbers<[1], [0], [0], [1], [0, 0, 1, 1], [], []>} : vector<8x8xf32>, vector<8x128xf32>, vector<8x128xf32> -> vector<8x128xf32>
    %136 = vector.broadcast %3 : vector<8x1xf32> to vector<8x128xf32>
    %137 = arith.addf %135, %136 : vector<8x128xf32>
    %cst_45 = arith.constant 0.000000e+00 : f32
    %138 = vector.broadcast %cst_45 : f32 to vector<8x128xf32>
    %139 = arith.maximumf %137, %138 : vector<8x128xf32>
    %cst_46 = arith.constant dense<0.000000e+00> : vector<128x128xf32>
    %140 = tpu.matmul %4, %139, %cst_46 {dimension_numbers = #tpu.dot_dimension_numbers<[1], [0], [0], [1], [0, 0, 1, 1], [], []>} : vector<128x8xf32>, vector<8x128xf32>, vector<128x128xf32> -> vector<128x128xf32>
    %141 = vector.broadcast %5 : vector<128x1xf32> to vector<128x128xf32>
    %142 = arith.addf %140, %141 : vector<128x128xf32>
    %143 = arith.negf %142 : vector<128x128xf32>
    %144 = math.exp %143 : vector<128x128xf32>
    %cst_47 = arith.constant 1.000000e+00 : f32
    %145 = vector.broadcast %cst_47 : f32 to vector<128x128xf32>
    %146 = arith.addf %145, %144 : vector<128x128xf32>
    %147 = arith.divf %145, %146 : vector<128x128xf32>
    %148 = vector.extract_strided_slice %147 {offsets = [0, 0], sizes = [8, 128], strides = [1, 1]} : vector<128x128xf32> to vector<8x128xf32>
    %c0_48 = arith.constant 0 : index
    %c0_49 = arith.constant 0 : index
    %c0_50 = arith.constant 0 : index
    %149 = vector.load %arg1[%c0_48, %c0_49, %c0_50] : memref<16x8x128xf32, #tpu.memory_space<vmem>>, vector<1x8x128xf32>
    %150 = vector.shape_cast %149 : vector<1x8x128xf32> to vector<8x128xf32>
    %151 = arith.mulf %150, %148 : vector<8x128xf32>
    %c0_51 = arith.constant 0 : index
    %c0_52 = arith.constant 0 : index
    %c0_53 = arith.constant 0 : index
    %152 = vector.load %arg8[%c0_51, %c0_52, %c0_53] : memref<16x8x128xf32, #tpu.memory_space<vmem>>, vector<1x8x128xf32>
    %153 = vector.shape_cast %152 : vector<1x8x128xf32> to vector<8x128xf32>
    %154 = vector.shape_cast %151 : vector<8x128xf32> to vector<1x8x128xf32>
    tpu.vector_store %arg8[%c0_51, %c0_52, %c0_53], %154 {strides = array<i32>} : memref<16x8x128xf32, #tpu.memory_space<vmem>>, vector<1x8x128xf32>,
    %155 = vector.extract_strided_slice %147 {offsets = [8, 0], sizes = [8, 128], strides = [1, 1]} : vector<128x128xf32> to vector<8x128xf32>
    %c1_54 = arith.constant 1 : index
    %c0_55 = arith.constant 0 : index
    %c0_56 = arith.constant 0 : index
    %156 = vector.load %arg1[%c1_54, %c0_55, %c0_56] : memref<16x8x128xf32, #tpu.memory_space<vmem>>, vector<1x8x128xf32>
    %157 = vector.shape_cast %156 : vector<1x8x128xf32> to vector<8x128xf32>
    %158 = arith.mulf %157, %155 : vector<8x128xf32>
    %c1_57 = arith.constant 1 : index
    %c0_58 = arith.constant 0 : index
    %c0_59 = arith.constant 0 : index
    %159 = vector.load %arg8[%c1_57, %c0_58, %c0_59] : memref<16x8x128xf32, #tpu.memory_space<vmem>>, vector<1x8x128xf32>
    %160 = vector.shape_cast %159 : vector<1x8x128xf32> to vector<8x128xf32>
    %161 = vector.shape_cast %158 : vector<8x128xf32> to vector<1x8x128xf32>
    tpu.vector_store %arg8[%c1_57, %c0_58, %c0_59], %161 {strides = array<i32>} : memref<16x8x128xf32, #tpu.memory_space<vmem>>, vector<1x8x128xf32>,
    %162 = vector.extract_strided_slice %147 {offsets = [16, 0], sizes = [8, 128], strides = [1, 1]} : vector<128x128xf32> to vector<8x128xf32>
    %c2_60 = arith.constant 2 : index
    %c0_61 = arith.constant 0 : index
    %c0_62 = arith.constant 0 : index
    %163 = vector.load %arg1[%c2_60, %c0_61, %c0_62] : memref<16x8x128xf32, #tpu.memory_space<vmem>>, vector<1x8x128xf32>
    %164 = vector.shape_cast %163 : vector<1x8x128xf32> to vector<8x128xf32>
    %165 = arith.mulf %164, %162 : vector<8x128xf32>
    %c2_63 = arith.constant 2 : index
    %c0_64 = arith.constant 0 : index
    %c0_65 = arith.constant 0 : index
    %166 = vector.load %arg8[%c2_63, %c0_64, %c0_65] : memref<16x8x128xf32, #tpu.memory_space<vmem>>, vector<1x8x128xf32>
    %167 = vector.shape_cast %166 : vector<1x8x128xf32> to vector<8x128xf32>
    %168 = vector.shape_cast %165 : vector<8x128xf32> to vector<1x8x128xf32>
    tpu.vector_store %arg8[%c2_63, %c0_64, %c0_65], %168 {strides = array<i32>} : memref<16x8x128xf32, #tpu.memory_space<vmem>>, vector<1x8x128xf32>,
    %169 = vector.extract_strided_slice %147 {offsets = [24, 0], sizes = [8, 128], strides = [1, 1]} : vector<128x128xf32> to vector<8x128xf32>
    %c3_66 = arith.constant 3 : index
    %c0_67 = arith.constant 0 : index
    %c0_68 = arith.constant 0 : index
    %170 = vector.load %arg1[%c3_66, %c0_67, %c0_68] : memref<16x8x128xf32, #tpu.memory_space<vmem>>, vector<1x8x128xf32>
    %171 = vector.shape_cast %170 : vector<1x8x128xf32> to vector<8x128xf32>
    %172 = arith.mulf %171, %169 : vector<8x128xf32>
    %c3_69 = arith.constant 3 : index
    %c0_70 = arith.constant 0 : index
    %c0_71 = arith.constant 0 : index
    %173 = vector.load %arg8[%c3_69, %c0_70, %c0_71] : memref<16x8x128xf32, #tpu.memory_space<vmem>>, vector<1x8x128xf32>
    %174 = vector.shape_cast %173 : vector<1x8x128xf32> to vector<8x128xf32>
    %175 = vector.shape_cast %172 : vector<8x128xf32> to vector<1x8x128xf32>
    tpu.vector_store %arg8[%c3_69, %c0_70, %c0_71], %175 {strides = array<i32>} : memref<16x8x128xf32, #tpu.memory_space<vmem>>, vector<1x8x128xf32>,
    %176 = vector.extract_strided_slice %147 {offsets = [32, 0], sizes = [8, 128], strides = [1, 1]} : vector<128x128xf32> to vector<8x128xf32>
    %c4_72 = arith.constant 4 : index
    %c0_73 = arith.constant 0 : index
    %c0_74 = arith.constant 0 : index
    %177 = vector.load %arg1[%c4_72, %c0_73, %c0_74] : memref<16x8x128xf32, #tpu.memory_space<vmem>>, vector<1x8x128xf32>
    %178 = vector.shape_cast %177 : vector<1x8x128xf32> to vector<8x128xf32>
    %179 = arith.mulf %178, %176 : vector<8x128xf32>
    %c4_75 = arith.constant 4 : index
    %c0_76 = arith.constant 0 : index
    %c0_77 = arith.constant 0 : index
    %180 = vector.load %arg8[%c4_75, %c0_76, %c0_77] : memref<16x8x128xf32, #tpu.memory_space<vmem>>, vector<1x8x128xf32>
    %181 = vector.shape_cast %180 : vector<1x8x128xf32> to vector<8x128xf32>
    %182 = vector.shape_cast %179 : vector<8x128xf32> to vector<1x8x128xf32>
    tpu.vector_store %arg8[%c4_75, %c0_76, %c0_77], %182 {strides = array<i32>} : memref<16x8x128xf32, #tpu.memory_space<vmem>>, vector<1x8x128xf32>,
    %183 = vector.extract_strided_slice %147 {offsets = [40, 0], sizes = [8, 128], strides = [1, 1]} : vector<128x128xf32> to vector<8x128xf32>
    %c5_78 = arith.constant 5 : index
    %c0_79 = arith.constant 0 : index
    %c0_80 = arith.constant 0 : index
    %184 = vector.load %arg1[%c5_78, %c0_79, %c0_80] : memref<16x8x128xf32, #tpu.memory_space<vmem>>, vector<1x8x128xf32>
    %185 = vector.shape_cast %184 : vector<1x8x128xf32> to vector<8x128xf32>
    %186 = arith.mulf %185, %183 : vector<8x128xf32>
    %c5_81 = arith.constant 5 : index
    %c0_82 = arith.constant 0 : index
    %c0_83 = arith.constant 0 : index
    %187 = vector.load %arg8[%c5_81, %c0_82, %c0_83] : memref<16x8x128xf32, #tpu.memory_space<vmem>>, vector<1x8x128xf32>
    %188 = vector.shape_cast %187 : vector<1x8x128xf32> to vector<8x128xf32>
    %189 = vector.shape_cast %186 : vector<8x128xf32> to vector<1x8x128xf32>
    tpu.vector_store %arg8[%c5_81, %c0_82, %c0_83], %189 {strides = array<i32>} : memref<16x8x128xf32, #tpu.memory_space<vmem>>, vector<1x8x128xf32>,
    %190 = vector.extract_strided_slice %147 {offsets = [48, 0], sizes = [8, 128], strides = [1, 1]} : vector<128x128xf32> to vector<8x128xf32>
    %c6_84 = arith.constant 6 : index
    %c0_85 = arith.constant 0 : index
    %c0_86 = arith.constant 0 : index
    %191 = vector.load %arg1[%c6_84, %c0_85, %c0_86] : memref<16x8x128xf32, #tpu.memory_space<vmem>>, vector<1x8x128xf32>
    %192 = vector.shape_cast %191 : vector<1x8x128xf32> to vector<8x128xf32>
    %193 = arith.mulf %192, %190 : vector<8x128xf32>
    %c6_87 = arith.constant 6 : index
    %c0_88 = arith.constant 0 : index
    %c0_89 = arith.constant 0 : index
    %194 = vector.load %arg8[%c6_87, %c0_88, %c0_89] : memref<16x8x128xf32, #tpu.memory_space<vmem>>, vector<1x8x128xf32>
    %195 = vector.shape_cast %194 : vector<1x8x128xf32> to vector<8x128xf32>
    %196 = vector.shape_cast %193 : vector<8x128xf32> to vector<1x8x128xf32>
    tpu.vector_store %arg8[%c6_87, %c0_88, %c0_89], %196 {strides = array<i32>} : memref<16x8x128xf32, #tpu.memory_space<vmem>>, vector<1x8x128xf32>,
    %197 = vector.extract_strided_slice %147 {offsets = [56, 0], sizes = [8, 128], strides = [1, 1]} : vector<128x128xf32> to vector<8x128xf32>
    %c7_90 = arith.constant 7 : index
    %c0_91 = arith.constant 0 : index
    %c0_92 = arith.constant 0 : index
    %198 = vector.load %arg1[%c7_90, %c0_91, %c0_92] : memref<16x8x128xf32, #tpu.memory_space<vmem>>, vector<1x8x128xf32>
    %199 = vector.shape_cast %198 : vector<1x8x128xf32> to vector<8x128xf32>
    %200 = arith.mulf %199, %197 : vector<8x128xf32>
    %c7_93 = arith.constant 7 : index
    %c0_94 = arith.constant 0 : index
    %c0_95 = arith.constant 0 : index
    %201 = vector.load %arg8[%c7_93, %c0_94, %c0_95] : memref<16x8x128xf32, #tpu.memory_space<vmem>>, vector<1x8x128xf32>
    %202 = vector.shape_cast %201 : vector<1x8x128xf32> to vector<8x128xf32>
    %203 = vector.shape_cast %200 : vector<8x128xf32> to vector<1x8x128xf32>
    tpu.vector_store %arg8[%c7_93, %c0_94, %c0_95], %203 {strides = array<i32>} : memref<16x8x128xf32, #tpu.memory_space<vmem>>, vector<1x8x128xf32>,
    %204 = vector.extract_strided_slice %147 {offsets = [64, 0], sizes = [8, 128], strides = [1, 1]} : vector<128x128xf32> to vector<8x128xf32>
    %c8_96 = arith.constant 8 : index
    %c0_97 = arith.constant 0 : index
    %c0_98 = arith.constant 0 : index
    %205 = vector.load %arg1[%c8_96, %c0_97, %c0_98] : memref<16x8x128xf32, #tpu.memory_space<vmem>>, vector<1x8x128xf32>
    %206 = vector.shape_cast %205 : vector<1x8x128xf32> to vector<8x128xf32>
    %207 = arith.mulf %206, %204 : vector<8x128xf32>
    %c8_99 = arith.constant 8 : index
    %c0_100 = arith.constant 0 : index
    %c0_101 = arith.constant 0 : index
    %208 = vector.load %arg8[%c8_99, %c0_100, %c0_101] : memref<16x8x128xf32, #tpu.memory_space<vmem>>, vector<1x8x128xf32>
    %209 = vector.shape_cast %208 : vector<1x8x128xf32> to vector<8x128xf32>
    %210 = vector.shape_cast %207 : vector<8x128xf32> to vector<1x8x128xf32>
    tpu.vector_store %arg8[%c8_99, %c0_100, %c0_101], %210 {strides = array<i32>} : memref<16x8x128xf32, #tpu.memory_space<vmem>>, vector<1x8x128xf32>,
    %211 = vector.extract_strided_slice %147 {offsets = [72, 0], sizes = [8, 128], strides = [1, 1]} : vector<128x128xf32> to vector<8x128xf32>
    %c9_102 = arith.constant 9 : index
    %c0_103 = arith.constant 0 : index
    %c0_104 = arith.constant 0 : index
    %212 = vector.load %arg1[%c9_102, %c0_103, %c0_104] : memref<16x8x128xf32, #tpu.memory_space<vmem>>, vector<1x8x128xf32>
    %213 = vector.shape_cast %212 : vector<1x8x128xf32> to vector<8x128xf32>
    %214 = arith.mulf %213, %211 : vector<8x128xf32>
    %c9_105 = arith.constant 9 : index
    %c0_106 = arith.constant 0 : index
    %c0_107 = arith.constant 0 : index
    %215 = vector.load %arg8[%c9_105, %c0_106, %c0_107] : memref<16x8x128xf32, #tpu.memory_space<vmem>>, vector<1x8x128xf32>
    %216 = vector.shape_cast %215 : vector<1x8x128xf32> to vector<8x128xf32>
    %217 = vector.shape_cast %214 : vector<8x128xf32> to vector<1x8x128xf32>
    tpu.vector_store %arg8[%c9_105, %c0_106, %c0_107], %217 {strides = array<i32>} : memref<16x8x128xf32, #tpu.memory_space<vmem>>, vector<1x8x128xf32>,
    %218 = vector.extract_strided_slice %147 {offsets = [80, 0], sizes = [8, 128], strides = [1, 1]} : vector<128x128xf32> to vector<8x128xf32>
    %c10_108 = arith.constant 10 : index
    %c0_109 = arith.constant 0 : index
    %c0_110 = arith.constant 0 : index
    %219 = vector.load %arg1[%c10_108, %c0_109, %c0_110] : memref<16x8x128xf32, #tpu.memory_space<vmem>>, vector<1x8x128xf32>
    %220 = vector.shape_cast %219 : vector<1x8x128xf32> to vector<8x128xf32>
    %221 = arith.mulf %220, %218 : vector<8x128xf32>
    %c10_111 = arith.constant 10 : index
    %c0_112 = arith.constant 0 : index
    %c0_113 = arith.constant 0 : index
    %222 = vector.load %arg8[%c10_111, %c0_112, %c0_113] : memref<16x8x128xf32, #tpu.memory_space<vmem>>, vector<1x8x128xf32>
    %223 = vector.shape_cast %222 : vector<1x8x128xf32> to vector<8x128xf32>
    %224 = vector.shape_cast %221 : vector<8x128xf32> to vector<1x8x128xf32>
    tpu.vector_store %arg8[%c10_111, %c0_112, %c0_113], %224 {strides = array<i32>} : memref<16x8x128xf32, #tpu.memory_space<vmem>>, vector<1x8x128xf32>,
    %225 = vector.extract_strided_slice %147 {offsets = [88, 0], sizes = [8, 128], strides = [1, 1]} : vector<128x128xf32> to vector<8x128xf32>
    %c11_114 = arith.constant 11 : index
    %c0_115 = arith.constant 0 : index
    %c0_116 = arith.constant 0 : index
    %226 = vector.load %arg1[%c11_114, %c0_115, %c0_116] : memref<16x8x128xf32, #tpu.memory_space<vmem>>, vector<1x8x128xf32>
    %227 = vector.shape_cast %226 : vector<1x8x128xf32> to vector<8x128xf32>
    %228 = arith.mulf %227, %225 : vector<8x128xf32>
    %c11_117 = arith.constant 11 : index
    %c0_118 = arith.constant 0 : index
    %c0_119 = arith.constant 0 : index
    %229 = vector.load %arg8[%c11_117, %c0_118, %c0_119] : memref<16x8x128xf32, #tpu.memory_space<vmem>>, vector<1x8x128xf32>
    %230 = vector.shape_cast %229 : vector<1x8x128xf32> to vector<8x128xf32>
    %231 = vector.shape_cast %228 : vector<8x128xf32> to vector<1x8x128xf32>
    tpu.vector_store %arg8[%c11_117, %c0_118, %c0_119], %231 {strides = array<i32>} : memref<16x8x128xf32, #tpu.memory_space<vmem>>, vector<1x8x128xf32>,
    %232 = vector.extract_strided_slice %147 {offsets = [96, 0], sizes = [8, 128], strides = [1, 1]} : vector<128x128xf32> to vector<8x128xf32>
    %c12_120 = arith.constant 12 : index
    %c0_121 = arith.constant 0 : index
    %c0_122 = arith.constant 0 : index
    %233 = vector.load %arg1[%c12_120, %c0_121, %c0_122] : memref<16x8x128xf32, #tpu.memory_space<vmem>>, vector<1x8x128xf32>
    %234 = vector.shape_cast %233 : vector<1x8x128xf32> to vector<8x128xf32>
    %235 = arith.mulf %234, %232 : vector<8x128xf32>
    %c12_123 = arith.constant 12 : index
    %c0_124 = arith.constant 0 : index
    %c0_125 = arith.constant 0 : index
    %236 = vector.load %arg8[%c12_123, %c0_124, %c0_125] : memref<16x8x128xf32, #tpu.memory_space<vmem>>, vector<1x8x128xf32>
    %237 = vector.shape_cast %236 : vector<1x8x128xf32> to vector<8x128xf32>
    %238 = vector.shape_cast %235 : vector<8x128xf32> to vector<1x8x128xf32>
    tpu.vector_store %arg8[%c12_123, %c0_124, %c0_125], %238 {strides = array<i32>} : memref<16x8x128xf32, #tpu.memory_space<vmem>>, vector<1x8x128xf32>,
    %239 = vector.extract_strided_slice %147 {offsets = [104, 0], sizes = [8, 128], strides = [1, 1]} : vector<128x128xf32> to vector<8x128xf32>
    %c13_126 = arith.constant 13 : index
    %c0_127 = arith.constant 0 : index
    %c0_128 = arith.constant 0 : index
    %240 = vector.load %arg1[%c13_126, %c0_127, %c0_128] : memref<16x8x128xf32, #tpu.memory_space<vmem>>, vector<1x8x128xf32>
    %241 = vector.shape_cast %240 : vector<1x8x128xf32> to vector<8x128xf32>
    %242 = arith.mulf %241, %239 : vector<8x128xf32>
    %c13_129 = arith.constant 13 : index
    %c0_130 = arith.constant 0 : index
    %c0_131 = arith.constant 0 : index
    %243 = vector.load %arg8[%c13_129, %c0_130, %c0_131] : memref<16x8x128xf32, #tpu.memory_space<vmem>>, vector<1x8x128xf32>
    %244 = vector.shape_cast %243 : vector<1x8x128xf32> to vector<8x128xf32>
    %245 = vector.shape_cast %242 : vector<8x128xf32> to vector<1x8x128xf32>
    tpu.vector_store %arg8[%c13_129, %c0_130, %c0_131], %245 {strides = array<i32>} : memref<16x8x128xf32, #tpu.memory_space<vmem>>, vector<1x8x128xf32>,
    %246 = vector.extract_strided_slice %147 {offsets = [112, 0], sizes = [8, 128], strides = [1, 1]} : vector<128x128xf32> to vector<8x128xf32>
    %c14_132 = arith.constant 14 : index
    %c0_133 = arith.constant 0 : index
    %c0_134 = arith.constant 0 : index
    %247 = vector.load %arg1[%c14_132, %c0_133, %c0_134] : memref<16x8x128xf32, #tpu.memory_space<vmem>>, vector<1x8x128xf32>
    %248 = vector.shape_cast %247 : vector<1x8x128xf32> to vector<8x128xf32>
    %249 = arith.mulf %248, %246 : vector<8x128xf32>
    %c14_135 = arith.constant 14 : index
    %c0_136 = arith.constant 0 : index
    %c0_137 = arith.constant 0 : index
    %250 = vector.load %arg8[%c14_135, %c0_136, %c0_137] : memref<16x8x128xf32, #tpu.memory_space<vmem>>, vector<1x8x128xf32>
    %251 = vector.shape_cast %250 : vector<1x8x128xf32> to vector<8x128xf32>
    %252 = vector.shape_cast %249 : vector<8x128xf32> to vector<1x8x128xf32>
    tpu.vector_store %arg8[%c14_135, %c0_136, %c0_137], %252 {strides = array<i32>} : memref<16x8x128xf32, #tpu.memory_space<vmem>>, vector<1x8x128xf32>,
    %253 = vector.extract_strided_slice %147 {offsets = [120, 0], sizes = [8, 128], strides = [1, 1]} : vector<128x128xf32> to vector<8x128xf32>
    %c15_138 = arith.constant 15 : index
    %c0_139 = arith.constant 0 : index
    %c0_140 = arith.constant 0 : index
    %254 = vector.load %arg1[%c15_138, %c0_139, %c0_140] : memref<16x8x128xf32, #tpu.memory_space<vmem>>, vector<1x8x128xf32>
    %255 = vector.shape_cast %254 : vector<1x8x128xf32> to vector<8x128xf32>
    %256 = arith.mulf %255, %253 : vector<8x128xf32>
    %c15_141 = arith.constant 15 : index
    %c0_142 = arith.constant 0 : index
    %c0_143 = arith.constant 0 : index
    %257 = vector.load %arg8[%c15_141, %c0_142, %c0_143] : memref<16x8x128xf32, #tpu.memory_space<vmem>>, vector<1x8x128xf32>
    %258 = vector.shape_cast %257 : vector<1x8x128xf32> to vector<8x128xf32>
    %259 = vector.shape_cast %256 : vector<8x128xf32> to vector<1x8x128xf32>
    tpu.vector_store %arg8[%c15_141, %c0_142, %c0_143], %259 {strides = array<i32>} : memref<16x8x128xf32, #tpu.memory_space<vmem>>, vector<1x8x128xf32>,
    return
  }
  func.func @transform_0(%arg0: i32) -> (i32, i32, i32) {
    %c0_i32 = arith.constant 0 : i32
    %c0_i32_0 = arith.constant 0 : i32
    %c0_i32_1 = arith.constant 0 : i32
    return %c0_i32, %c0_i32_0, %arg0 : i32, i32, i32
  }
  func.func @transform_1(%arg0: i32) -> (i32, i32, i32) {
    %c0_i32 = arith.constant 0 : i32
    %c0_i32_0 = arith.constant 0 : i32
    %c0_i32_1 = arith.constant 0 : i32
    %c0_i32_2 = arith.constant 0 : i32
    return %c0_i32, %c0_i32_0, %c0_i32_1 : i32, i32, i32
  }
  func.func @transform_2(%arg0: i32) -> (i32, i32) {
    %c0_i32 = arith.constant 0 : i32
    %c0_i32_0 = arith.constant 0 : i32
    %c0_i32_1 = arith.constant 0 : i32
    return %c0_i32, %c0_i32_0 : i32, i32
  }
  func.func @transform_3(%arg0: i32) -> (i32, i32) {
    %c0_i32 = arith.constant 0 : i32
    %c0_i32_0 = arith.constant 0 : i32
    %c0_i32_1 = arith.constant 0 : i32
    return %c0_i32, %c0_i32_0 : i32, i32
  }
  func.func @transform_4(%arg0: i32) -> (i32, i32) {
    %c0_i32 = arith.constant 0 : i32
    %c0_i32_0 = arith.constant 0 : i32
    %c0_i32_1 = arith.constant 0 : i32
    return %c0_i32, %c0_i32_0 : i32, i32
  }
  func.func @transform_5(%arg0: i32) -> (i32, i32) {
    %c0_i32 = arith.constant 0 : i32
    %c0_i32_0 = arith.constant 0 : i32
    %c0_i32_1 = arith.constant 0 : i32
    return %c0_i32, %c0_i32_0 : i32, i32
  }
  func.func @transform_6(%arg0: i32) -> (i32, i32) {
    %c0_i32 = arith.constant 0 : i32
    %c0_i32_0 = arith.constant 0 : i32
    %c0_i32_1 = arith.constant 0 : i32
    return %c0_i32, %c0_i32_0 : i32, i32
  }
  func.func @transform_7(%arg0: i32) -> (i32, i32, i32) {
    %c0_i32 = arith.constant 0 : i32
    %c0_i32_0 = arith.constant 0 : i32
    %c0_i32_1 = arith.constant 0 : i32
    return %c0_i32, %c0_i32_0, %arg0 : i32, i32, i32
  }
}

</mosaic_0001>

<llo_original>
// kernel: tpu_custom_call.1
$region0: #{tpu_custom_call.1}
  #allocation0 [shape = 'u32[]', space=smem, size = 0x4, offset = 0x4, fixed_abs, tag = 'smem constant byte address 0x4 - core index']
  #allocation1 [shape = 'u32[144,128]{1,0:T(1,128)}', space=vmem, size = 0x12000, scoped, tag = 'internal scratch']
  %s0 = inlined_call_operand.vmem [shape: f32[16,8,128], index: 0, kind: input, shape index: {}]
  %s1 = inlined_call_operand.vmem [shape: f32[16,8,1], index: 1, kind: input, shape index: {}]
  %s2 = inlined_call_operand.vmem [shape: f32[8,1], index: 2, kind: input, shape index: {}]
  %s3 = inlined_call_operand.vmem [shape: f32[8,8], index: 3, kind: input, shape index: {}]
  %s4 = inlined_call_operand.vmem [shape: f32[8,1], index: 4, kind: input, shape index: {}]
  %s5 = inlined_call_operand.vmem [shape: f32[128,8], index: 5, kind: input, shape index: {}]
  %s6 = inlined_call_operand.vmem [shape: f32[128,1], index: 6, kind: input, shape index: {}]
  %s7 = inlined_call_operand.hbm [shape: f32[16,8,128], index: 7, kind: output, shape index: {}]
  %s8 = sld [smem:[#allocation0]]
  $region38: #{tpu_custom_call.1} parent=0
    _
  %s10 = ssub.s32 1, %s8
  %s11 = scalar_select 0, %s10, %s8
  $region1: #{tpu_custom_call.1} parent=0
    #allocation2 [shape = 'u8[65536]{0}', space=vmem, size = 0x10000, scoped, tag = 'output window, operand 0, single buffered']
    #allocation3 [shape = 's32[1]{0}', space=sflag, size = 0x4, scoped, tag = 'scoped memory for tpu_custom_call.1']
    %12 = vsyncpa [#allocation3], 0
    // Predicated region
    $region2: #{tpu_custom_call.1} parent=1 // pred_check
      _
    $region3: #{tpu_custom_call.1} parent=1 // pred_check_branch
      %14 = sbr.rel (0) target = $region5
    $region4: #{tpu_custom_call.1} parent=1 // pred_region
      _
    $region5: #{tpu_custom_call.1} parent=1 // pred_fallthru
      _
    // Predicated region
    $region6: #{tpu_custom_call.1} parent=1 // pred_check
      _
    $region7: #{tpu_custom_call.1} parent=1 // pred_check_branch
      %16 = sbr.rel (0) target = $region9
    $region8: #{tpu_custom_call.1} parent=1 // pred_region
      _
    $region9: #{tpu_custom_call.1} parent=1 // pred_fallthru
      _
    // Predicated region
    $region10: #{tpu_custom_call.1} parent=1 // pred_check
      _
    $region11: #{tpu_custom_call.1} parent=1 // pred_check_branch
      %18 = sbr.rel (0) target = $region13
    $region12: #{tpu_custom_call.1} parent=1 // pred_region
      _
    $region13: #{tpu_custom_call.1} parent=1 // pred_fallthru
      _
    // Predicated region
    $region14: #{tpu_custom_call.1} parent=1 // pred_check
      _
    $region15: #{tpu_custom_call.1} parent=1 // pred_check_branch
      %20 = sbr.rel (0) target = $region17
    $region16: #{tpu_custom_call.1} parent=1 // pred_region
      _
    $region17: #{tpu_custom_call.1} parent=1 // pred_fallthru
      _
    // Predicated region
    $region18: #{tpu_custom_call.1} parent=1 // pred_check
      _
    $region19: #{tpu_custom_call.1} parent=1 // pred_check_branch
      %22 = sbr.rel (0) target = $region21
    $region20: #{tpu_custom_call.1} parent=1 // pred_region
      _
    $region21: #{tpu_custom_call.1} parent=1 // pred_fallthru
      _
    // Predicated region
    $region22: #{tpu_custom_call.1} parent=1 // pred_check
      _
    $region23: #{tpu_custom_call.1} parent=1 // pred_check_branch
      %24 = sbr.rel (0) target = $region25
    $region24: #{tpu_custom_call.1} parent=1 // pred_region
      _
    $region25: #{tpu_custom_call.1} parent=1 // pred_fallthru
      _
    // Predicated region
    $region26: #{tpu_custom_call.1} parent=1 // pred_check
      _
    $region27: #{tpu_custom_call.1} parent=1 // pred_check_branch
      %26 = sbr.rel (0) target = $region29
    $region28: #{tpu_custom_call.1} parent=1 // pred_region
      _
    $region29: #{tpu_custom_call.1} parent=1 // pred_fallthru
      _
    %v27 = vld [vmem:[%s1] sm:$0xff]
    %v28 = vld [vmem:[%s1 + $0x8] sm:$0xff]
    %v29 = vld [vmem:[%s1 + $0x10] sm:$0xff]
    %v30 = vld [vmem:[%s1 + $0x18] sm:$0xff]
    %v31 = vld [vmem:[%s1 + $0x20] sm:$0xff]
    %v32 = vld [vmem:[%s1 + $0x28] sm:$0xff]
    %v33 = vld [vmem:[%s1 + $0x30] sm:$0xff]
    %v34 = vld [vmem:[%s1 + $0x38] sm:$0xff]
    %v35 = vld [vmem:[%s1 + $0x40] sm:$0xff]
    %v36 = vld [vmem:[%s1 + $0x48] sm:$0xff]
    %v37 = vld [vmem:[%s1 + $0x50] sm:$0xff]
    %v38 = vld [vmem:[%s1 + $0x58] sm:$0xff]
    %v39 = vld [vmem:[%s1 + $0x60] sm:$0xff]
    %v40 = vld [vmem:[%s1 + $0x68] sm:$0xff]
    %v41 = vld [vmem:[%s1 + $0x70] sm:$0xff]
    %v42 = vld [vmem:[%s1 + $0x78] sm:$0xff]
    %v43 = vld [vmem:[%s2] sm:$0xff]
    %v44 = vld [vmem:[%s3] sm:$0xff]
    %v45 = vld [vmem:[%s4] sm:$0xff]
    %v46 = vld [vmem:[%s5] sm:$0xff]
    %v47 = vld [vmem:[%s5 + $0x8] sm:$0xff]
    %v48 = vld [vmem:[%s5 + $0x10] sm:$0xff]
    %v49 = vld [vmem:[%s5 + $0x18] sm:$0xff]
    %v50 = vld [vmem:[%s5 + $0x20] sm:$0xff]
    %v51 = vld [vmem:[%s5 + $0x28] sm:$0xff]
    %v52 = vld [vmem:[%s5 + $0x30] sm:$0xff]
    %v53 = vld [vmem:[%s5 + $0x38] sm:$0xff]
    %v54 = vld [vmem:[%s5 + $0x40] sm:$0xff]
    %v55 = vld [vmem:[%s5 + $0x48] sm:$0xff]
    %v56 = vld [vmem:[%s5 + $0x50] sm:$0xff]
    %v57 = vld [vmem:[%s5 + $0x58] sm:$0xff]
    %v58 = vld [vmem:[%s5 + $0x60] sm:$0xff]
    %v59 = vld [vmem:[%s5 + $0x68] sm:$0xff]
    %v60 = vld [vmem:[%s5 + $0x70] sm:$0xff]
    %v61 = vld [vmem:[%s5 + $0x78] sm:$0xff]
    %v62 = vld [vmem:[%s6] sm:$0xff]
    %v63 = vld [vmem:[%s6 + $0x8] sm:$0xff]
    %v64 = vld [vmem:[%s6 + $0x10] sm:$0xff]
    %v65 = vld [vmem:[%s6 + $0x18] sm:$0xff]
    %v66 = vld [vmem:[%s6 + $0x20] sm:$0xff]
    %v67 = vld [vmem:[%s6 + $0x28] sm:$0xff]
    %v68 = vld [vmem:[%s6 + $0x30] sm:$0xff]
    %v69 = vld [vmem:[%s6 + $0x38] sm:$0xff]
    %v70 = vld [vmem:[%s6 + $0x40] sm:$0xff]
    %v71 = vld [vmem:[%s6 + $0x48] sm:$0xff]
    %v72 = vld [vmem:[%s6 + $0x50] sm:$0xff]
    %v73 = vld [vmem:[%s6 + $0x58] sm:$0xff]
    %v74 = vld [vmem:[%s6 + $0x60] sm:$0xff]
    %v75 = vld [vmem:[%s6 + $0x68] sm:$0xff]
    %v76 = vld [vmem:[%s6 + $0x70] sm:$0xff]
    %v77 = vld [vmem:[%s6 + $0x78] sm:$0xff]
    %v78 = vld [vmem:[%s0] sm:$0xff]
    %80 = vset.pattern.permute.xlu0 0
    %81 = vperm.xlu0 %80, %v27
    %v82 = vpop.permute.xlu0 %81
    %v84 = vmul.f32 %v78, %v82
    %s85 = scalar_lea.vmem %s0, 8
    %v86 = vld [vmem:[%s85] sm:$0xff]
    %v87 = vmax.f32 %v78, %v86
    %89 = vset.pattern.permute.xlu0 0
    %90 = vperm.xlu0 %89, %v28
    %v91 = vpop.permute.xlu0 %90
    %v93 = vmul.f32 %v86, %v91
    %v94 = vadd.f32 %v84, %v93
    %s95 = scalar_lea.vmem %s0, 16
    %v96 = vld [vmem:[%s95] sm:$0xff]
    %v97 = vmax.f32 %v87, %v96
    %99 = vset.pattern.permute.xlu0 0
    %100 = vperm.xlu0 %99, %v29
    %v101 = vpop.permute.xlu0 %100
    %v103 = vmul.f32 %v96, %v101
    %v104 = vadd.f32 %v94, %v103
    %s105 = scalar_lea.vmem %s0, 24
    %v106 = vld [vmem:[%s105] sm:$0xff]
    %v107 = vmax.f32 %v97, %v106
    %109 = vset.pattern.permute.xlu0 0
    %110 = vperm.xlu0 %109, %v30
    %v111 = vpop.permute.xlu0 %110
    %v113 = vmul.f32 %v106, %v111
    %v114 = vadd.f32 %v104, %v113
    %s115 = scalar_lea.vmem %s0, 32
    %v116 = vld [vmem:[%s115] sm:$0xff]
    %v117 = vmax.f32 %v107, %v116
    %119 = vset.pattern.permute.xlu0 0
    %120 = vperm.xlu0 %119, %v31
    %v121 = vpop.permute.xlu0 %120
    %v123 = vmul.f32 %v116, %v121
    %v124 = vadd.f32 %v114, %v123
    %s125 = scalar_lea.vmem %s0, 40
    %v126 = vld [vmem:[%s125] sm:$0xff]
    %v127 = vmax.f32 %v117, %v126
    %129 = vset.pattern.permute.xlu0 0
    %130 = vperm.xlu0 %129, %v32
    %v131 = vpop.permute.xlu0 %130
    %v133 = vmul.f32 %v126, %v131
    %v134 = vadd.f32 %v124, %v133
    %s135 = scalar_lea.vmem %s0, 48
    %v136 = vld [vmem:[%s135] sm:$0xff]
    %v137 = vmax.f32 %v127, %v136
    %139 = vset.pattern.permute.xlu0 0
    %140 = vperm.xlu0 %139, %v33
    %v141 = vpop.permute.xlu0 %140
    %v143 = vmul.f32 %v136, %v141
    %v144 = vadd.f32 %v134, %v143
    %s145 = scalar_lea.vmem %s0, 56
    %v146 = vld [vmem:[%s145] sm:$0xff]
    %v147 = vmax.f32 %v137, %v146
    %149 = vset.pattern.permute.xlu0 0
    %150 = vperm.xlu0 %149, %v34
    %v151 = vpop.permute.xlu0 %150
    %v153 = vmul.f32 %v146, %v151
    %v154 = vadd.f32 %v144, %v153
    %s155 = scalar_lea.vmem %s0, 64
    %v156 = vld [vmem:[%s155] sm:$0xff]
    %v157 = vmax.f32 %v147, %v156
    %159 = vset.pattern.permute.xlu0 0
    %160 = vperm.xlu0 %159, %v35
    %v161 = vpop.permute.xlu0 %160
    %v163 = vmul.f32 %v156, %v161
    %v164 = vadd.f32 %v154, %v163
    %s165 = scalar_lea.vmem %s0, 72
    %v166 = vld [vmem:[%s165] sm:$0xff]
    %v167 = vmax.f32 %v157, %v166
    %169 = vset.pattern.permute.xlu0 0
    %170 = vperm.xlu0 %169, %v36
    %v171 = vpop.permute.xlu0 %170
    %v173 = vmul.f32 %v166, %v171
    %v174 = vadd.f32 %v164, %v173
    %s175 = scalar_lea.vmem %s0, 80
    %v176 = vld [vmem:[%s175] sm:$0xff]
    %v177 = vmax.f32 %v167, %v176
    %179 = vset.pattern.permute.xlu0 0
    %180 = vperm.xlu0 %179, %v37
    %v181 = vpop.permute.xlu0 %180
    %v183 = vmul.f32 %v176, %v181
    %v184 = vadd.f32 %v174, %v183
    %s185 = scalar_lea.vmem %s0, 88
    %v186 = vld [vmem:[%s185] sm:$0xff]
    %v187 = vmax.f32 %v177, %v186
    %189 = vset.pattern.permute.xlu0 0
    %190 = vperm.xlu0 %189, %v38
    %v191 = vpop.permute.xlu0 %190
    %v193 = vmul.f32 %v186, %v191
    %v194 = vadd.f32 %v184, %v193
    %s195 = scalar_lea.vmem %s0, 96
    %v196 = vld [vmem:[%s195] sm:$0xff]
    %v197 = vmax.f32 %v187, %v196
    %199 = vset.pattern.permute.xlu0 0
    %200 = vperm.xlu0 %199, %v39
    %v201 = vpop.permute.xlu0 %200
    %v203 = vmul.f32 %v196, %v201
    %v204 = vadd.f32 %v194, %v203
    %s205 = scalar_lea.vmem %s0, 104
    %v206 = vld [vmem:[%s205] sm:$0xff]
    %v207 = vmax.f32 %v197, %v206
    %209 = vset.pattern.permute.xlu0 0
    %210 = vperm.xlu0 %209, %v40
    %v211 = vpop.permute.xlu0 %210
    %v213 = vmul.f32 %v206, %v211
    %v214 = vadd.f32 %v204, %v213
    %s215 = scalar_lea.vmem %s0, 112
    %v216 = vld [vmem:[%s215] sm:$0xff]
    %v217 = vmax.f32 %v207, %v216
    %219 = vset.pattern.permute.xlu0 0
    %220 = vperm.xlu0 %219, %v41
    %v221 = vpop.permute.xlu0 %220
    %v223 = vmul.f32 %v216, %v221
    %v224 = vadd.f32 %v214, %v223
    %s225 = scalar_lea.vmem %s0, 120
    %v226 = vld [vmem:[%s225] sm:$0xff]
    %v227 = vmax.f32 %v217, %v226
    %229 = vset.pattern.permute.xlu0 0
    %230 = vperm.xlu0 %229, %v42
    %v231 = vpop.permute.xlu0 %230
    %v233 = vmul.f32 %v226, %v231
    %v234 = vadd.f32 %v224, %v233
    %v235 = vadd.f32 %v227, %v234
    %237 = vset.pattern.permute.xlu0 0
    %238 = vperm.xlu0 %237, %v43
    %v239 = vpop.permute.xlu0 %238
    %v241 = vadd.f32 %v235, %v239
    %243 = vset.pattern.permute.xlu0 0
    %244 = vperm.xlu0 %243, %v45
    %v245 = vpop.permute.xlu0 %244
    %vm247 = vcmask 64512
    %v249 = vsel %vm247, %v44, 0
    %251 = vmatprep.subr.mxu0 0.0
    %252 = vmatpush1.msra.mxu0 %v241
    %253 = vmatprep.subr.mxu0 0.0
    %254 = vmatpush1.msra.mxu0 0.0
    %255 = vmatprep.subr.mxu0 0.0
    %256 = vmatpush1.msra.mxu0 0.0
    %257 = vmatprep.subr.mxu0 0.0
    %258 = vmatpush1.msra.mxu0 0.0
    %259 = vmatprep.subr.mxu0 0.0
    %260 = vmatpush1.msra.mxu0 0.0
    %261 = vmatprep.subr.mxu0 0.0
    %262 = vmatpush1.msra.mxu0 0.0
    %263 = vmatprep.subr.mxu0 0.0
    %264 = vmatpush1.msra.mxu0 0.0
    %265 = vmatprep.subr.mxu0 0.0
    %266 = vmatpush1.msra.mxu0 0.0
    %267 = vmatprep.subr.mxu0 0.0
    %268 = vmatpush1.msra.mxu0 0.0
    %269 = vmatprep.subr.mxu0 0.0
    %270 = vmatpush1.msra.mxu0 0.0
    %271 = vmatprep.subr.mxu0 0.0
    %272 = vmatpush1.msra.mxu0 0.0
    %273 = vmatprep.subr.mxu0 0.0
    %274 = vmatpush1.msra.mxu0 0.0
    %275 = vmatprep.subr.mxu0 0.0
    %276 = vmatpush1.msra.mxu0 0.0
    %277 = vmatprep.subr.mxu0 0.0
    %278 = vmatpush1.msra.mxu0 0.0
    %279 = vmatprep.subr.mxu0 0.0
    %280 = vmatpush1.msra.mxu0 0.0
    %281 = vmatprep.subr.mxu0 0.0
    %282 = vmatpush1.msra.mxu0 0.0
    %283 = vmatprep.subr.mxu0 0.0
    %284 = vmatpush1.msra.mxu0 0.0
    %285 = vmatprep.subr.mxu0 0.0
    %286 = vmatpush1.msra.mxu0 0.0
    %287 = vmatprep.subr.mxu0 0.0
    %288 = vmatpush1.msra.mxu0 0.0
    %289 = vmatprep.subr.mxu0 0.0
    %290 = vmatpush1.msra.mxu0 0.0
    %291 = vmatprep.subr.mxu0 0.0
    %292 = vmatpush1.msra.mxu0 0.0
    %293 = vmatprep.subr.mxu0 0.0
    %294 = vmatpush1.msra.mxu0 0.0
    %295 = vmatprep.subr.mxu0 0.0
    %296 = vmatpush1.msra.mxu0 0.0
    %297 = vmatprep.subr.mxu0 0.0
    %298 = vmatpush1.msra.mxu0 0.0
    %299 = vmatprep.subr.mxu0 0.0
    %300 = vmatpush1.msra.mxu0 0.0
    %301 = vmatprep.subr.mxu0 0.0
    %302 = vmatpush1.msra.mxu0 0.0
    %303 = vmatprep.subr.mxu0 0.0
    %304 = vmatpush1.msra.mxu0 0.0
    %305 = vmatprep.subr.mxu0 0.0
    %306 = vmatpush1.msra.mxu0 0.0
    %307 = vmatprep.subr.mxu0 0.0
    %308 = vmatpush1.msra.mxu0 0.0
    %309 = vmatprep.subr.mxu0 0.0
    %310 = vmatpush1.msra.mxu0 0.0
    %311 = vmatprep.subr.mxu0 0.0
    %312 = vmatpush1.msra.mxu0 0.0
    %313 = vmatprep.subr.mxu0 0.0
    %314 = vmatpush1.msra.mxu0 0.0
    %315 = vmatprep.mubr.f32.mxu0 0.0
    %316 = vmatmul.mubr.f32.gmra.mrb[0].mxu0 %v249
    %v317 = vpop.f32.mrb[0].mxu0
    %v318 = vadd.f32 %v245, %v317
    %v319 = vpop.f32.mrb[0].mxu0
    %320 = vdwg.mxu0
    %v321 = vmax.f32 %v318, 0.0
    %323 = vset.pattern.permute.xlu0 0
    %324 = vperm.xlu0 %323, %v62
    %v325 = vpop.permute.xlu0 %324
    %328 = vset.pattern.permute.xlu0 0
    %329 = vperm.xlu0 %328, %v63
    %v330 = vpop.permute.xlu0 %329
    %333 = vset.pattern.permute.xlu0 0
    %334 = vperm.xlu0 %333, %v64
    %v335 = vpop.permute.xlu0 %334
    %338 = vset.pattern.permute.xlu0 0
    %339 = vperm.xlu0 %338, %v65
    %v340 = vpop.permute.xlu0 %339
    %343 = vset.pattern.permute.xlu0 0
    %344 = vperm.xlu0 %343, %v66
    %v345 = vpop.permute.xlu0 %344
    %348 = vset.pattern.permute.xlu0 0
    %349 = vperm.xlu0 %348, %v67
    %v350 = vpop.permute.xlu0 %349
    %353 = vset.pattern.permute.xlu0 0
    %354 = vperm.xlu0 %353, %v68
    %v355 = vpop.permute.xlu0 %354
    %358 = vset.pattern.permute.xlu0 0
    %359 = vperm.xlu0 %358, %v69
    %v360 = vpop.permute.xlu0 %359
    %363 = vset.pattern.permute.xlu0 0
    %364 = vperm.xlu0 %363, %v70
    %v365 = vpop.permute.xlu0 %364
    %368 = vset.pattern.permute.xlu0 0
    %369 = vperm.xlu0 %368, %v71
    %v370 = vpop.permute.xlu0 %369
    %373 = vset.pattern.permute.xlu0 0
    %374 = vperm.xlu0 %373, %v72
    %v375 = vpop.permute.xlu0 %374
    %378 = vset.pattern.permute.xlu0 0
    %379 = vperm.xlu0 %378, %v73
    %v380 = vpop.permute.xlu0 %379
    %383 = vset.pattern.permute.xlu0 0
    %384 = vperm.xlu0 %383, %v74
    %v385 = vpop.permute.xlu0 %384
    %388 = vset.pattern.permute.xlu0 0
    %389 = vperm.xlu0 %388, %v75
    %v390 = vpop.permute.xlu0 %389
    %393 = vset.pattern.permute.xlu0 0
    %394 = vperm.xlu0 %393, %v76
    %v395 = vpop.permute.xlu0 %394
    %398 = vset.pattern.permute.xlu0 0
    %399 = vperm.xlu0 %398, %v77
    %v400 = vpop.permute.xlu0 %399
    %v403 = vsel %vm247, %v46, 0
    %v406 = vsel %vm247, %v47, 0
    %v409 = vsel %vm247, %v48, 0
    %v412 = vsel %vm247, %v49, 0
    %v415 = vsel %vm247, %v50, 0
    %v418 = vsel %vm247, %v51, 0
    %v421 = vsel %vm247, %v52, 0
    %v424 = vsel %vm247, %v53, 0
    %v427 = vsel %vm247, %v54, 0
    %v430 = vsel %vm247, %v55, 0
    %v433 = vsel %vm247, %v56, 0
    %v436 = vsel %vm247, %v57, 0
    %v439 = vsel %vm247, %v58, 0
    %v442 = vsel %vm247, %v59, 0
    %v445 = vsel %vm247, %v60, 0
    %v448 = vsel %vm247, %v61, 0
    %450 = vmatprep.subr.mxu0 0.0
    %451 = vmatpush1.msra.mxu0 %v321
    %452 = vmatprep.subr.mxu0 0.0
    %453 = vmatpush1.msra.mxu0 0.0
    %454 = vmatprep.subr.mxu0 0.0
    %455 = vmatpush1.msra.mxu0 0.0
    %456 = vmatprep.subr.mxu0 0.0
    %457 = vmatpush1.msra.mxu0 0.0
    %458 = vmatprep.subr.mxu0 0.0
    %459 = vmatpush1.msra.mxu0 0.0
    %460 = vmatprep.subr.mxu0 0.0
    %461 = vmatpush1.msra.mxu0 0.0
    %462 = vmatprep.subr.mxu0 0.0
    %463 = vmatpush1.msra.mxu0 0.0
    %464 = vmatprep.subr.mxu0 0.0
    %465 = vmatpush1.msra.mxu0 0.0
    %466 = vmatprep.subr.mxu0 0.0
    %467 = vmatpush1.msra.mxu0 0.0
    %468 = vmatprep.subr.mxu0 0.0
    %469 = vmatpush1.msra.mxu0 0.0
    %470 = vmatprep.subr.mxu0 0.0
    %471 = vmatpush1.msra.mxu0 0.0
    %472 = vmatprep.subr.mxu0 0.0
    %473 = vmatpush1.msra.mxu0 0.0
    %474 = vmatprep.subr.mxu0 0.0
    %475 = vmatpush1.msra.mxu0 0.0
    %476 = vmatprep.subr.mxu0 0.0
    %477 = vmatpush1.msra.mxu0 0.0
    %478 = vmatprep.subr.mxu0 0.0
    %479 = vmatpush1.msra.mxu0 0.0
    %480 = vmatprep.subr.mxu0 0.0
    %481 = vmatpush1.msra.mxu0 0.0
    %482 = vmatprep.subr.mxu0 0.0
    %483 = vmatpush1.msra.mxu0 0.0
    %484 = vmatprep.subr.mxu0 0.0
    %485 = vmatpush1.msra.mxu0 0.0
    %486 = vmatprep.subr.mxu0 0.0
    %487 = vmatpush1.msra.mxu0 0.0
    %488 = vmatprep.subr.mxu0 0.0
    %489 = vmatpush1.msra.mxu0 0.0
    %490 = vmatprep.subr.mxu0 0.0
    %491 = vmatpush1.msra.mxu0 0.0
    %492 = vmatprep.subr.mxu0 0.0
    %493 = vmatpush1.msra.mxu0 0.0
    %494 = vmatprep.subr.mxu0 0.0
    %495 = vmatpush1.msra.mxu0 0.0
    %496 = vmatprep.subr.mxu0 0.0
    %497 = vmatpush1.msra.mxu0 0.0
    %498 = vmatprep.subr.mxu0 0.0
    %499 = vmatpush1.msra.mxu0 0.0
    %500 = vmatprep.subr.mxu0 0.0
    %501 = vmatpush1.msra.mxu0 0.0
    %502 = vmatprep.subr.mxu0 0.0
    %503 = vmatpush1.msra.mxu0 0.0
    %504 = vmatprep.subr.mxu0 0.0
    %505 = vmatpush1.msra.mxu0 0.0
    %506 = vmatprep.subr.mxu0 0.0
    %507 = vmatpush1.msra.mxu0 0.0
    %508 = vmatprep.subr.mxu0 0.0
    %509 = vmatpush1.msra.mxu0 0.0
    %510 = vmatprep.subr.mxu0 0.0
    %511 = vmatpush1.msra.mxu0 0.0
    %512 = vmatprep.subr.mxu0 0.0
    %513 = vmatpush1.msra.mxu0 0.0
    %514 = vmatprep.mubr.f32.mxu0 0.0
    %515 = vmatmul.mubr.f32.gmra.mrb[0].mxu0 %v403
    %v516 = vpop.f32.mrb[0].mxu0
    %v517 = vadd.f32 %v325, %v516
    %v518 = vpop.f32.mrb[0].mxu0
    %519 = vmatprep.mubr.f32.mxu0 0.0
    %520 = vmatmul.mubr.f32.gmra.mrb[0].mxu0 %v406
    %v521 = vpop.f32.mrb[0].mxu0
    %v522 = vadd.f32 %v330, %v521
    %v523 = vpop.f32.mrb[0].mxu0
    %524 = vmatprep.mubr.f32.mxu0 0.0
    %525 = vmatmul.mubr.f32.gmra.mrb[0].mxu0 %v409
    %v526 = vpop.f32.mrb[0].mxu0
    %v527 = vadd.f32 %v335, %v526
    %v528 = vpop.f32.mrb[0].mxu0
    %529 = vmatprep.mubr.f32.mxu0 0.0
    %530 = vmatmul.mubr.f32.gmra.mrb[0].mxu0 %v412
    %v531 = vpop.f32.mrb[0].mxu0
    %v532 = vadd.f32 %v340, %v531
    %v533 = vpop.f32.mrb[0].mxu0
    %534 = vmatprep.mubr.f32.mxu0 0.0
    %535 = vmatmul.mubr.f32.gmra.mrb[0].mxu0 %v415
    %v536 = vpop.f32.mrb[0].mxu0
    %v537 = vadd.f32 %v345, %v536
    %v538 = vpop.f32.mrb[0].mxu0
    %539 = vmatprep.mubr.f32.mxu0 0.0
    %540 = vmatmul.mubr.f32.gmra.mrb[0].mxu0 %v418
    %v541 = vpop.f32.mrb[0].mxu0
    %v542 = vadd.f32 %v350, %v541
    %v543 = vpop.f32.mrb[0].mxu0
    %544 = vmatprep.mubr.f32.mxu0 0.0
    %545 = vmatmul.mubr.f32.gmra.mrb[0].mxu0 %v421
    %v546 = vpop.f32.mrb[0].mxu0
    %v547 = vadd.f32 %v355, %v546
    %v548 = vpop.f32.mrb[0].mxu0
    %549 = vmatprep.mubr.f32.mxu0 0.0
    %550 = vmatmul.mubr.f32.gmra.mrb[0].mxu0 %v424
    %v551 = vpop.f32.mrb[0].mxu0
    %v552 = vadd.f32 %v360, %v551
    %v553 = vpop.f32.mrb[0].mxu0
    %554 = vmatprep.mubr.f32.mxu0 0.0
    %555 = vmatmul.mubr.f32.gmra.mrb[0].mxu0 %v427
    %v556 = vpop.f32.mrb[0].mxu0
    %v557 = vadd.f32 %v365, %v556
    %v558 = vpop.f32.mrb[0].mxu0
    %559 = vmatprep.mubr.f32.mxu0 0.0
    %560 = vmatmul.mubr.f32.gmra.mrb[0].mxu0 %v430
    %v561 = vpop.f32.mrb[0].mxu0
    %v562 = vadd.f32 %v370, %v561
    %v563 = vpop.f32.mrb[0].mxu0
    %564 = vmatprep.mubr.f32.mxu0 0.0
    %565 = vmatmul.mubr.f32.gmra.mrb[0].mxu0 %v433
    %v566 = vpop.f32.mrb[0].mxu0
    %v567 = vadd.f32 %v375, %v566
    %v568 = vpop.f32.mrb[0].mxu0
    %569 = vmatprep.mubr.f32.mxu0 0.0
    %570 = vmatmul.mubr.f32.gmra.mrb[0].mxu0 %v436
    %v571 = vpop.f32.mrb[0].mxu0
    %v572 = vadd.f32 %v380, %v571
    %v573 = vpop.f32.mrb[0].mxu0
    %574 = vmatprep.mubr.f32.mxu0 0.0
    %575 = vmatmul.mubr.f32.gmra.mrb[0].mxu0 %v439
    %v576 = vpop.f32.mrb[0].mxu0
    %v577 = vadd.f32 %v385, %v576
    %v578 = vpop.f32.mrb[0].mxu0
    %579 = vmatprep.mubr.f32.mxu0 0.0
    %580 = vmatmul.mubr.f32.gmra.mrb[0].mxu0 %v442
    %v581 = vpop.f32.mrb[0].mxu0
    %v582 = vadd.f32 %v390, %v581
    %v583 = vpop.f32.mrb[0].mxu0
    %584 = vmatprep.mubr.f32.mxu0 0.0
    %585 = vmatmul.mubr.f32.gmra.mrb[0].mxu0 %v445
    %v586 = vpop.f32.mrb[0].mxu0
    %v587 = vadd.f32 %v395, %v586
    %v588 = vpop.f32.mrb[0].mxu0
    %589 = vmatprep.mubr.f32.mxu0 0.0
    %590 = vmatmul.mubr.f32.gmra.mrb[0].mxu0 %v448
    %v591 = vpop.f32.mrb[0].mxu0
    %v592 = vadd.f32 %v400, %v591
    %v593 = vpop.f32.mrb[0].mxu0
    %594 = vdwg.mxu0
    %v595 = vxor.u32 %v517, 2147483648
    %v596 = vxor.u32 %v522, 2147483648
    %v597 = vxor.u32 %v527, 2147483648
    %v598 = vxor.u32 %v532, 2147483648
    %v599 = vxor.u32 %v537, 2147483648
    %v600 = vxor.u32 %v542, 2147483648
    %v601 = vxor.u32 %v547, 2147483648
    %v602 = vxor.u32 %v552, 2147483648
    %v603 = vxor.u32 %v557, 2147483648
    %v604 = vxor.u32 %v562, 2147483648
    %v605 = vxor.u32 %v567, 2147483648
    %v606 = vxor.u32 %v572, 2147483648
    %v607 = vxor.u32 %v577, 2147483648
    %v608 = vxor.u32 %v582, 2147483648
    %v609 = vxor.u32 %v587, 2147483648
    %v610 = vxor.u32 %v592, 2147483648
    %v611 = vmul.f32 %v595, 1.442695
    %v612 = vpow.pop %v611
    %v613 = vmul.f32 %v596, 1.442695
    %v614 = vpow.pop %v613
    %v615 = vmul.f32 %v597, 1.442695
    %v616 = vpow.pop %v615
    %v617 = vmul.f32 %v598, 1.442695
    %v618 = vpow.pop %v617
    %v619 = vmul.f32 %v599, 1.442695
    %v620 = vpow.pop %v619
    %v621 = vmul.f32 %v600, 1.442695
    %v622 = vpow.pop %v621
    %v623 = vmul.f32 %v601, 1.442695
    %v624 = vpow.pop %v623
    %v625 = vmul.f32 %v602, 1.442695
    %v626 = vpow.pop %v625
    %v627 = vmul.f32 %v603, 1.442695
    %v628 = vpow.pop %v627
    %v629 = vmul.f32 %v604, 1.442695
    %v630 = vpow.pop %v629
    %v631 = vmul.f32 %v605, 1.442695
    %v632 = vpow.pop %v631
    %v633 = vmul.f32 %v606, 1.442695
    %v634 = vpow.pop %v633
    %v635 = vmul.f32 %v607, 1.442695
    %v636 = vpow.pop %v635
    %v637 = vmul.f32 %v608, 1.442695
    %v638 = vpow.pop %v637
    %v639 = vmul.f32 %v609, 1.442695
    %v640 = vpow.pop %v639
    %v641 = vmul.f32 %v610, 1.442695
    %v642 = vpow.pop %v641
    %v643 = vadd.f32 %v612, 1.0
    %v644 = vadd.f32 %v614, 1.0
    %v645 = vadd.f32 %v616, 1.0
    %v646 = vadd.f32 %v618, 1.0
    %v647 = vadd.f32 %v620, 1.0
    %v648 = vadd.f32 %v622, 1.0
    %v649 = vadd.f32 %v624, 1.0
    %v650 = vadd.f32 %v626, 1.0
    %v651 = vadd.f32 %v628, 1.0
    %v652 = vadd.f32 %v630, 1.0
    %v653 = vadd.f32 %v632, 1.0
    %v654 = vadd.f32 %v634, 1.0
    %v655 = vadd.f32 %v636, 1.0
    %v656 = vadd.f32 %v638, 1.0
    %v657 = vadd.f32 %v640, 1.0
    %v658 = vadd.f32 %v642, 1.0
    %v659 = vrcp.pop %v643
    %v660 = vmul.f32 1.0, %v659
    %v661 = vrcp.pop %v644
    %v662 = vmul.f32 1.0, %v661
    %v663 = vrcp.pop %v645
    %v664 = vmul.f32 1.0, %v663
    %v665 = vrcp.pop %v646
    %v666 = vmul.f32 1.0, %v665
    %v667 = vrcp.pop %v647
    %v668 = vmul.f32 1.0, %v667
    %v669 = vrcp.pop %v648
    %v670 = vmul.f32 1.0, %v669
    %v671 = vrcp.pop %v649
    %v672 = vmul.f32 1.0, %v671
    %v673 = vrcp.pop %v650
    %v674 = vmul.f32 1.0, %v673
    %v675 = vrcp.pop %v651
    %v676 = vmul.f32 1.0, %v675
    %v677 = vrcp.pop %v652
    %v678 = vmul.f32 1.0, %v677
    %v679 = vrcp.pop %v653
    %v680 = vmul.f32 1.0, %v679
    %v681 = vrcp.pop %v654
    %v682 = vmul.f32 1.0, %v681
    %v683 = vrcp.pop %v655
    %v684 = vmul.f32 1.0, %v683
    %v685 = vrcp.pop %v656
    %v686 = vmul.f32 1.0, %v685
    %v687 = vrcp.pop %v657
    %v688 = vmul.f32 1.0, %v687
    %v689 = vrcp.pop %v658
    %v690 = vmul.f32 1.0, %v689
    %v691 = vmul.f32 %v78, %v660
    %692 = vst [vmem:[#allocation2] sm:$0xff] %v691
    %v693 = vld [vmem:[%s85] sm:$0xff]
    %v694 = vmul.f32 %v693, %v662
    %s695 = scalar_lea.vmem [#allocation2], 8
    %696 = vst [vmem:[%s695] sm:$0xff] %v694
    %v697 = vld [vmem:[%s95] sm:$0xff]
    %v698 = vmul.f32 %v697, %v664
    %s699 = scalar_lea.vmem [#allocation2], 16
    %700 = vst [vmem:[%s699] sm:$0xff] %v698
    %v701 = vld [vmem:[%s105] sm:$0xff]
    %v702 = vmul.f32 %v701, %v666
    %s703 = scalar_lea.vmem [#allocation2], 24
    %704 = vst [vmem:[%s703] sm:$0xff] %v702
    %v705 = vld [vmem:[%s115] sm:$0xff]
    %v706 = vmul.f32 %v705, %v668
    %s707 = scalar_lea.vmem [#allocation2], 32
    %708 = vst [vmem:[%s707] sm:$0xff] %v706
    %v709 = vld [vmem:[%s125] sm:$0xff]
    %v710 = vmul.f32 %v709, %v670
    %s711 = scalar_lea.vmem [#allocation2], 40
    %712 = vst [vmem:[%s711] sm:$0xff] %v710
    %v713 = vld [vmem:[%s135] sm:$0xff]
    %v714 = vmul.f32 %v713, %v672
    %s715 = scalar_lea.vmem [#allocation2], 48
    %716 = vst [vmem:[%s715] sm:$0xff] %v714
    %v717 = vld [vmem:[%s145] sm:$0xff]
    %v718 = vmul.f32 %v717, %v674
    %s719 = scalar_lea.vmem [#allocation2], 56
    %720 = vst [vmem:[%s719] sm:$0xff] %v718
    %v721 = vld [vmem:[%s155] sm:$0xff]
    %v722 = vmul.f32 %v721, %v676
    %s723 = scalar_lea.vmem [#allocation2], 64
    %724 = vst [vmem:[%s723] sm:$0xff] %v722
    %v725 = vld [vmem:[%s165] sm:$0xff]
    %v726 = vmul.f32 %v725, %v678
    %s727 = scalar_lea.vmem [#allocation2], 72
    %728 = vst [vmem:[%s727] sm:$0xff] %v726
    %v729 = vld [vmem:[%s175] sm:$0xff]
    %v730 = vmul.f32 %v729, %v680
    %s731 = scalar_lea.vmem [#allocation2], 80
    %732 = vst [vmem:[%s731] sm:$0xff] %v730
    %v733 = vld [vmem:[%s185] sm:$0xff]
    %v734 = vmul.f32 %v733, %v682
    %s735 = scalar_lea.vmem [#allocation2], 88
    %736 = vst [vmem:[%s735] sm:$0xff] %v734
    %v737 = vld [vmem:[%s195] sm:$0xff]
    %v738 = vmul.f32 %v737, %v684
    %s739 = scalar_lea.vmem [#allocation2], 96
    %740 = vst [vmem:[%s739] sm:$0xff] %v738
    %v741 = vld [vmem:[%s205] sm:$0xff]
    %v742 = vmul.f32 %v741, %v686
    %s743 = scalar_lea.vmem [#allocation2], 104
    %744 = vst [vmem:[%s743] sm:$0xff] %v742
    %v745 = vld [vmem:[%s215] sm:$0xff]
    %v746 = vmul.f32 %v745, %v688
    %s747 = scalar_lea.vmem [#allocation2], 112
    %748 = vst [vmem:[%s747] sm:$0xff] %v746
    %v749 = vld [vmem:[%s225] sm:$0xff]
    %v750 = vmul.f32 %v749, %v690
    %s751 = scalar_lea.vmem [#allocation2], 120
    %752 = vst [vmem:[%s751] sm:$0xff] %v750
    // Predicated region
    $region30: #{tpu_custom_call.1} parent=1 // pred_check
      _
    $region31: #{tpu_custom_call.1} parent=1 // pred_check_branch
      %754 = sbr.rel (0) target = $region33
    $region32: #{tpu_custom_call.1} parent=1 // pred_region
      %s756 = ssub.s32 2048, 2048
      %757 = vsyncadd [#allocation3], %s756
      %s758 = sshll.u32 [#allocation2], 4
      %s759 = int_to_ptr.vmem [resolvable:$true] %s758
      %764 = dma.vmem_to_hbm [thread:$0]  %s759, 2048, %s7, [#allocation3], 128, 128, 8
    $region33: #{tpu_custom_call.1} parent=1 // pred_fallthru
      _
    // Predicated region
    $region34: #{tpu_custom_call.1} parent=1 // pred_check
      _
    $region35: #{tpu_custom_call.1} parent=1 // pred_check_branch
      %766 = sbr.rel (0) target = $region37
    $region36: #{tpu_custom_call.1} parent=1 // pred_region
      %767 = dma.done [#allocation3], 2048
    $region37: #{tpu_custom_call.1} parent=1 // pred_fallthru
      _
    %768 = vsyncpa [#allocation3], 1

</llo_original>
